<compile_context>
chip_gen: v7x
topology: tpu7x:2x2x1
jax: 0.10.0
libtpu: 0.0.40
codegen_flags: <defaults>
</compile_context>

<pallas_src>
import jax
import jax.numpy as jnp
from jax.experimental import pallas as pl
from jax.experimental.pallas import tpu as pltpu

# ---- problem sizes (small, TPU-tile friendly) --------------------------------
N_ENC = 2          # number of encoders
CHUNK = 64         # per-encoder input features  (total input F = N_ENC*CHUNK)
LATENT = 64        # per-encoder latent features (total latent = N_ENC*LATENT)
OUT = 128          # decoder output features
B = 16             # batch (NB: at B=16 the op is launch/DMA bound; batch more
                   #     rows if the surrounding model allows to fill the MXU)
NORMALIZE = True   # normalize_flag in the reference module
EPS = 1e-12        # F.normalize eps
F_IN = N_ENC * CHUNK
F_LAT = N_ENC * LATENT
BIAS_W = max(F_LAT, OUT)   # packed-bias row width (here F_LAT == OUT == 128)


def _multi_enc_dec_kernel(x_ref, we_ref, wd_ref, bias_ref, o_ref):
    """Whole forward pass in one invocation (all operands lane-dense, in VMEM).

    x_ref   : (B, F_IN)       input
    we_ref  : (F_IN, F_LAT)   block-diagonal fused encoder weight
    wd_ref  : (F_LAT, OUT)    decoder weight
    bias_ref: (2, BIAS_W)     row 0 = concatenated encoder bias, row 1 = decoder bias
    o_ref   : (B, OUT)        output
    """
    x = x_ref[...]

    # encode(): split -> per-encoder Linear -> concat  ==  one block-diag matmul
    z = jnp.dot(x, we_ref[...], preferred_element_type=jnp.float32)
    z = z + bias_ref[0:1, :F_LAT]

    # nn.functional.normalize(z, p=2, dim=1): z / max(||z||_2, eps)
    if NORMALIZE:
        sumsq = jnp.sum(z * z, axis=1, keepdims=True)
        inv_norm = jax.lax.rsqrt(jnp.maximum(sumsq, EPS * EPS))  # == 1/max(||z||, eps)
        z = z * inv_norm

    # decoder (Linear)
    out = jnp.dot(z, wd_ref[...], preferred_element_type=jnp.float32)
    out = out + bias_ref[1:2, :OUT]
    o_ref[...] = out.astype(o_ref.dtype)


def prepare_fused_params(w_enc, b_enc, w_dec, b_dec):
    """One-time parameter prep (done alongside module init, NOT per call):
    block-diagonal fused encoder weight and packed (2, 128) bias array.

    Note: the block-diagonal fusion is O(N_ENC^2) in padded weight bytes; for
    N_ENC >= 4-8 switch to a grid axis over encoders instead.
    """
    w_enc_bd = jnp.zeros((F_IN, F_LAT), jnp.float32)
    for i in range(N_ENC):
        w_enc_bd = w_enc_bd.at[i * CHUNK:(i + 1) * CHUNK,
                               i * LATENT:(i + 1) * LATENT].set(w_enc[i])
    bias = jnp.zeros((2, BIAS_W), jnp.float32)
    bias = bias.at[0, :F_LAT].set(b_enc.reshape(F_LAT))
    bias = bias.at[1, :OUT].set(b_dec.reshape(OUT))
    return w_enc_bd, jnp.asarray(w_dec, jnp.float32), bias


@jax.jit
def multi_encoder_decoder(x, w_enc_bd, w_dec, bias_packed):
    """x: (B, F_IN) f32; w_enc_bd: (F_IN, F_LAT); w_dec: (F_LAT, OUT);
    bias_packed: (2, BIAS_W). Returns (B, OUT) f32."""
    vmem = pl.BlockSpec(memory_space=pltpu.MemorySpace.VMEM)
    return pl.pallas_call(
        _multi_enc_dec_kernel,
        out_shape=jax.ShapeDtypeStruct((x.shape[0], OUT), jnp.float32),
        in_specs=[vmem, vmem, vmem, vmem],   # whole-array blocks, no grid/pipeline
        out_specs=vmem,
    )(x, w_enc_bd, w_dec, bias_packed)


def reference(x, w_enc, b_enc, w_dec, b_dec):
    """Pure-JAX reference mirroring the PyTorch forward (per-encoder split)."""
    zs = []
    for i in range(N_ENC):
        xi = x[:, i * CHUNK:(i + 1) * CHUNK]
        zs.append(xi @ w_enc[i] + b_enc[i])
    z = jnp.concatenate(zs, axis=1)
    if NORMALIZE:
        norm = jnp.sqrt(jnp.sum(z * z, axis=1, keepdims=True))
        z = z / jnp.maximum(norm, EPS)
    return z @ w_dec + b_dec


if __name__ == "__main__":
    key = jax.random.PRNGKey(0)
    kx, kwe, kbe, kwd, kbd = jax.random.split(key, 5)

    # deterministic synthetic parameters (Linear-layer shapes from __init__)
    x = jax.random.normal(kx, (B, F_IN), dtype=jnp.float32)
    w_enc = jax.random.normal(kwe, (N_ENC, CHUNK, LATENT), jnp.float32) * 0.1
    b_enc = jax.random.normal(kbe, (N_ENC, LATENT), jnp.float32) * 0.1
    w_dec = jax.random.normal(kwd, (F_LAT, OUT), jnp.float32) * 0.1
    b_dec = jax.random.normal(kbd, (1, OUT), jnp.float32) * 0.1

    # One-time fused-parameter preparation (outside the forward hot path).
    w_enc_bd, w_dec_f, bias_packed = jax.block_until_ready(
        prepare_fused_params(w_enc, b_enc, w_dec, b_dec))

    out = multi_encoder_decoder(x, w_enc_bd, w_dec_f, bias_packed)
    out = jax.block_until_ready(out)

    ref = reference(x, w_enc, b_enc, w_dec, b_dec)
    assert out.shape == (B, OUT)
    assert jnp.allclose(out, ref, atol=1e-4, rtol=1e-4), "mismatch vs reference"

    print("KERNEL_OK")
</pallas_src>

<mosaic_0001>
module attributes {stable_mosaic.version = 11 : i64} {
  func.func @_multi_enc_dec_kernel(%arg0: memref<16x128xf32, #tpu.memory_space<vmem>>, %arg1: memref<128x128xf32, #tpu.memory_space<vmem>>, %arg2: memref<128x128xf32, #tpu.memory_space<vmem>>, %arg3: memref<2x128xf32, #tpu.memory_space<vmem>>, %arg4: memref<16x128xf32, #tpu.memory_space<vmem>>) attributes {dimension_semantics = [], scalar_prefetch = 0 : i64, scratch_operands = 0 : i64, tpu.core_type = #tpu.core_type<tc>} {
    %c0 = arith.constant 0 : index
    %c0_0 = arith.constant 0 : index
    %0 = vector.load %arg0[%c0, %c0_0] : memref<16x128xf32, #tpu.memory_space<vmem>>, vector<16x128xf32>
    %c0_1 = arith.constant 0 : index
    %c0_2 = arith.constant 0 : index
    %1 = vector.load %arg1[%c0_1, %c0_2] : memref<128x128xf32, #tpu.memory_space<vmem>>, vector<128x128xf32>
    %cst = arith.constant dense<0.000000e+00> : vector<16x128xf32>
    %2 = tpu.matmul %0, %1, %cst {dimension_numbers = #tpu.dot_dimension_numbers<[1], [0], [0], [1], [0, 0, 1, 1], [], []>} : vector<16x128xf32>, vector<128x128xf32>, vector<16x128xf32> -> vector<16x128xf32>
    %c0_3 = arith.constant 0 : index
    %c0_4 = arith.constant 0 : index
    %3 = vector.load %arg3[%c0_3, %c0_4] : memref<2x128xf32, #tpu.memory_space<vmem>>, vector<1x128xf32>
    %4 = vector.broadcast %3 : vector<1x128xf32> to vector<16x128xf32>
    %5 = arith.addf %2, %4 : vector<16x128xf32>
    %6 = arith.mulf %5, %5 : vector<16x128xf32>
    %cst_5 = arith.constant dense<0.000000e+00> : vector<16xf32>
    %7 = vector.multi_reduction <add>, %6, %cst_5 [1] : vector<16x128xf32> to vector<16xf32>
    %8 = vector.shape_cast %7 : vector<16xf32> to vector<16x1xf32>
    %cst_6 = arith.constant 1.000000e-24 : f32
    %9 = vector.broadcast %cst_6 : f32 to vector<16x1xf32>
    %10 = arith.maximumf %8, %9 : vector<16x1xf32>
    %11 = math.rsqrt %10 : vector<16x1xf32>
    %12 = vector.broadcast %11 : vector<16x1xf32> to vector<16x128xf32>
    %13 = arith.mulf %5, %12 : vector<16x128xf32>
    %c0_7 = arith.constant 0 : index
    %c0_8 = arith.constant 0 : index
    %14 = vector.load %arg2[%c0_7, %c0_8] : memref<128x128xf32, #tpu.memory_space<vmem>>, vector<128x128xf32>
    %cst_9 = arith.constant dense<0.000000e+00> : vector<16x128xf32>
    %15 = tpu.matmul %13, %14, %cst_9 {dimension_numbers = #tpu.dot_dimension_numbers<[1], [0], [0], [1], [0, 0, 1, 1], [], []>} : vector<16x128xf32>, vector<128x128xf32>, vector<16x128xf32> -> vector<16x128xf32>
    %c1 = arith.constant 1 : index
    %c0_10 = arith.constant 0 : index
    %16 = vector.load %arg3[%c1, %c0_10] : memref<2x128xf32, #tpu.memory_space<vmem>>, vector<1x128xf32>
    %17 = vector.broadcast %16 : vector<1x128xf32> to vector<16x128xf32>
    %18 = arith.addf %15, %17 : vector<16x128xf32>
    %c0_11 = arith.constant 0 : index
    %c0_12 = arith.constant 0 : index
    %19 = vector.load %arg4[%c0_11, %c0_12] : memref<16x128xf32, #tpu.memory_space<vmem>>, vector<16x128xf32>
    tpu.vector_store %arg4[%c0_11, %c0_12], %18 {strides = array<i32>} : memref<16x128xf32, #tpu.memory_space<vmem>>, vector<16x128xf32>,
    return
  }
}

</mosaic_0001>

<llo_original>
// kernel: multi_encoder_decoder.1
$region0: #{multi_encoder_decoder.1}
  #allocation0 [shape = 'u32[]', space=smem, size = 0x4, offset = 0x4, fixed_abs, tag = 'smem constant byte address 0x4 - core index']
  #allocation1 [shape = 'u32[144,128]{1,0:T(1,128)}', space=vmem, size = 0x12000, scoped, tag = 'internal scratch']
  %s0 = inlined_call_operand.hbm [shape: f32[16,128], index: 0, kind: input, shape index: {}]
  %s1 = inlined_call_operand.hbm [shape: f32[128,128], index: 1, kind: input, shape index: {}]
  %s2 = inlined_call_operand.hbm [shape: f32[128,128], index: 2, kind: input, shape index: {}]
  %s3 = inlined_call_operand.vmem [shape: f32[2,128], index: 3, kind: input, shape index: {}]
  %s4 = inlined_call_operand.hbm [shape: f32[16,128], index: 4, kind: output, shape index: {}]
  %s5 = sld [smem:[#allocation0]]
  $region38: #{multi_encoder_decoder.1} parent=0
    _
  %s7 = ssub.s32 1, %s5
  %s8 = scalar_select 0, %s7, %s5
  $region1: #{multi_encoder_decoder.1} parent=0
    #allocation2 [shape = 'u8[8192]{0}', space=vmem, size = 0x2000, scoped, tag = 'input window, operand 0, single buffered']
    #allocation3 [shape = 's32[1]{0}', space=sflag, size = 0x4, scoped, tag = 'scoped memory for multi_encoder_decoder.1']
    #allocation4 [shape = 's32[1]{0}', space=sflag, size = 0x4, scoped, tag = 'scoped memory for multi_encoder_decoder.1']
    #allocation5 [shape = 'u8[65536]{0}', space=vmem, size = 0x10000, scoped, tag = 'input window, operand 1, single buffered']
    #allocation6 [shape = 's32[1]{0}', space=sflag, size = 0x4, scoped, tag = 'scoped memory for multi_encoder_decoder.1']
    #allocation7 [shape = 'u8[65536]{0}', space=vmem, size = 0x10000, scoped, tag = 'input window, operand 2, single buffered']
    #allocation8 [shape = 'u8[8192]{0}', space=vmem, size = 0x2000, scoped, tag = 'output window, operand 0, single buffered']
    %9 = vsyncpa [#allocation3], 0
    %10 = vsyncpa [#allocation6], 0
    %11 = vsyncpa [#allocation4], 0
    // Predicated region
    $region2: #{multi_encoder_decoder.1} parent=1 // pred_check
      _
    $region3: #{multi_encoder_decoder.1} parent=1 // pred_check_branch
      %13 = sbr.rel (0) target = $region5
    $region4: #{multi_encoder_decoder.1} parent=1 // pred_region
      %s15 = ssub.s32 256, 256
      %16 = vsyncadd [#allocation3], %s15
      %s17 = sshll.u32 [#allocation2], 4
      %s18 = int_to_ptr.vmem [resolvable:$true] %s17
      %23 = dma.hbm_to_vmem [thread:$0]  %s0, 256, %s18, [#allocation3], 128, 128, 8
    $region5: #{multi_encoder_decoder.1} parent=1 // pred_fallthru
      _
    // Predicated region
    $region6: #{multi_encoder_decoder.1} parent=1 // pred_check
      _
    $region7: #{multi_encoder_decoder.1} parent=1 // pred_check_branch
      %25 = sbr.rel (0) target = $region9
    $region8: #{multi_encoder_decoder.1} parent=1 // pred_region
      %s27 = ssub.s32 2048, 2048
      %28 = vsyncadd [#allocation6], %s27
      %s29 = sshll.u32 [#allocation5], 4
      %s30 = int_to_ptr.vmem [resolvable:$true] %s29
      %35 = dma.hbm_to_vmem [thread:$0]  %s1, 2048, %s30, [#allocation6], 128, 128, 8
    $region9: #{multi_encoder_decoder.1} parent=1 // pred_fallthru
      _
    // Predicated region
    $region10: #{multi_encoder_decoder.1} parent=1 // pred_check
      _
    $region11: #{multi_encoder_decoder.1} parent=1 // pred_check_branch
      %37 = sbr.rel (0) target = $region13
    $region12: #{multi_encoder_decoder.1} parent=1 // pred_region
      %s39 = ssub.s32 2048, 2048
      %40 = vsyncadd [#allocation6], %s39
      %s41 = sshll.u32 [#allocation7], 4
      %s42 = int_to_ptr.vmem [resolvable:$true] %s41
      %47 = dma.hbm_to_vmem [thread:$0]  %s2, 2048, %s42, [#allocation6], 128, 128, 8
    $region13: #{multi_encoder_decoder.1} parent=1 // pred_fallthru
      _
    // Predicated region
    $region14: #{multi_encoder_decoder.1} parent=1 // pred_check
      _
    $region15: #{multi_encoder_decoder.1} parent=1 // pred_check_branch
      %49 = sbr.rel (0) target = $region17
    $region16: #{multi_encoder_decoder.1} parent=1 // pred_region
      _
    $region17: #{multi_encoder_decoder.1} parent=1 // pred_fallthru
      _
    // Predicated region
    $region18: #{multi_encoder_decoder.1} parent=1 // pred_check
      _
    $region19: #{multi_encoder_decoder.1} parent=1 // pred_check_branch
      %51 = sbr.rel (0) target = $region21
    $region20: #{multi_encoder_decoder.1} parent=1 // pred_region
      %52 = dma.done [#allocation3], 256
    $region21: #{multi_encoder_decoder.1} parent=1 // pred_fallthru
      _
    // Predicated region
    $region22: #{multi_encoder_decoder.1} parent=1 // pred_check
      _
    $region23: #{multi_encoder_decoder.1} parent=1 // pred_check_branch
      %54 = sbr.rel (0) target = $region25
    $region24: #{multi_encoder_decoder.1} parent=1 // pred_region
      %55 = dma.done [#allocation6], 2048
    $region25: #{multi_encoder_decoder.1} parent=1 // pred_fallthru
      _
    // Predicated region
    $region26: #{multi_encoder_decoder.1} parent=1 // pred_check
      _
    $region27: #{multi_encoder_decoder.1} parent=1 // pred_check_branch
      %57 = sbr.rel (0) target = $region29
    $region28: #{multi_encoder_decoder.1} parent=1 // pred_region
      %58 = dma.done [#allocation6], 2048
    $region29: #{multi_encoder_decoder.1} parent=1 // pred_fallthru
      _
    %v59 = vld [vmem:[#allocation2] sm:$0xff]
    %v60 = vld [vmem:[#allocation2 + $0x8] sm:$0xff]
    %v61 = vld [vmem:[#allocation5] sm:$0xff]
    %v62 = vld [vmem:[#allocation5 + $0x8] sm:$0xff]
    %v63 = vld [vmem:[#allocation5 + $0x10] sm:$0xff]
    %v64 = vld [vmem:[#allocation5 + $0x18] sm:$0xff]
    %v65 = vld [vmem:[#allocation5 + $0x20] sm:$0xff]
    %v66 = vld [vmem:[#allocation5 + $0x28] sm:$0xff]
    %v67 = vld [vmem:[#allocation5 + $0x30] sm:$0xff]
    %v68 = vld [vmem:[#allocation5 + $0x38] sm:$0xff]
    %v69 = vld [vmem:[#allocation5 + $0x40] sm:$0xff]
    %v70 = vld [vmem:[#allocation5 + $0x48] sm:$0xff]
    %v71 = vld [vmem:[#allocation5 + $0x50] sm:$0xff]
    %v72 = vld [vmem:[#allocation5 + $0x58] sm:$0xff]
    %v73 = vld [vmem:[#allocation5 + $0x60] sm:$0xff]
    %v74 = vld [vmem:[#allocation5 + $0x68] sm:$0xff]
    %v75 = vld [vmem:[#allocation5 + $0x70] sm:$0xff]
    %v76 = vld [vmem:[#allocation5 + $0x78] sm:$0xff]
    %v77 = vld [vmem:[%s3] sm:$0x1]
    %v78 = vlaneseq
    %v79 = vshrl.u32 %v78, 7
    %v80 = vsub.s32 0, %v79
    %v81 = vrot.slane %v77, %v80
    %82 = vmatprep.subr.mxu0 0.0
    %83 = vmatpush1.msra.mxu0 %v61
    %84 = vmatprep.subr.mxu0 0.0
    %85 = vmatpush1.msra.mxu0 %v62
    %86 = vmatprep.subr.mxu0 0.0
    %87 = vmatpush1.msra.mxu0 %v63
    %88 = vmatprep.subr.mxu0 0.0
    %89 = vmatpush1.msra.mxu0 %v64
    %90 = vmatprep.subr.mxu0 0.0
    %91 = vmatpush1.msra.mxu0 %v65
    %92 = vmatprep.subr.mxu0 0.0
    %93 = vmatpush1.msra.mxu0 %v66
    %94 = vmatprep.subr.mxu0 0.0
    %95 = vmatpush1.msra.mxu0 %v67
    %96 = vmatprep.subr.mxu0 0.0
    %97 = vmatpush1.msra.mxu0 %v68
    %98 = vmatprep.subr.mxu0 0.0
    %99 = vmatpush1.msra.mxu0 %v69
    %100 = vmatprep.subr.mxu0 0.0
    %101 = vmatpush1.msra.mxu0 %v70
    %102 = vmatprep.subr.mxu0 0.0
    %103 = vmatpush1.msra.mxu0 %v71
    %104 = vmatprep.subr.mxu0 0.0
    %105 = vmatpush1.msra.mxu0 %v72
    %106 = vmatprep.subr.mxu0 0.0
    %107 = vmatpush1.msra.mxu0 %v73
    %108 = vmatprep.subr.mxu0 0.0
    %109 = vmatpush1.msra.mxu0 %v74
    %110 = vmatprep.subr.mxu0 0.0
    %111 = vmatpush1.msra.mxu0 %v75
    %112 = vmatprep.subr.mxu0 0.0
    %113 = vmatpush1.msra.mxu0 %v76
    %114 = vmatprep.subr.mxu0 0.0
    %115 = vmatpush1.msra.mxu0 0.0
    %116 = vmatprep.subr.mxu0 0.0
    %117 = vmatpush1.msra.mxu0 0.0
    %118 = vmatprep.subr.mxu0 0.0
    %119 = vmatpush1.msra.mxu0 0.0
    %120 = vmatprep.subr.mxu0 0.0
    %121 = vmatpush1.msra.mxu0 0.0
    %122 = vmatprep.subr.mxu0 0.0
    %123 = vmatpush1.msra.mxu0 0.0
    %124 = vmatprep.subr.mxu0 0.0
    %125 = vmatpush1.msra.mxu0 0.0
    %126 = vmatprep.subr.mxu0 0.0
    %127 = vmatpush1.msra.mxu0 0.0
    %128 = vmatprep.subr.mxu0 0.0
    %129 = vmatpush1.msra.mxu0 0.0
    %130 = vmatprep.subr.mxu0 0.0
    %131 = vmatpush1.msra.mxu0 0.0
    %132 = vmatprep.subr.mxu0 0.0
    %133 = vmatpush1.msra.mxu0 0.0
    %134 = vmatprep.subr.mxu0 0.0
    %135 = vmatpush1.msra.mxu0 0.0
    %136 = vmatprep.subr.mxu0 0.0
    %137 = vmatpush1.msra.mxu0 0.0
    %138 = vmatprep.subr.mxu0 0.0
    %139 = vmatpush1.msra.mxu0 0.0
    %140 = vmatprep.subr.mxu0 0.0
    %141 = vmatpush1.msra.mxu0 0.0
    %142 = vmatprep.subr.mxu0 0.0
    %143 = vmatpush1.msra.mxu0 0.0
    %144 = vmatprep.subr.mxu0 0.0
    %145 = vmatpush1.msra.mxu0 0.0
    %146 = vmatprep.mubr.f32.mxu0 0.0
    %147 = vmatmul.mubr.f32.gmra.mrb[0].mxu0 %v59
    %v148 = vpop.f32.mrb[0].mxu0
    %v149 = vadd.f32 %v81, %v148
    %v150 = vpop.f32.mrb[0].mxu0
    %151 = vmatprep.mubr.f32.mxu0 0.0
    %152 = vmatmul.mubr.f32.gmra.mrb[0].mxu0 %v60
    %v153 = vpop.f32.mrb[0].mxu0
    %v154 = vadd.f32 %v81, %v153
    %v155 = vpop.f32.mrb[0].mxu0
    %156 = vdwg.mxu0
    %v157 = vmul.f32 %v149, %v149
    %v158 = vmul.f32 %v154, %v154
    %159 = vadd.xlane.f32.xlu0 %v157
    %v160 = vpop.xlane.xlu0 %159
    %161 = vadd.xlane.f32.xlu0 %v158
    %v162 = vpop.xlane.xlu0 %161
    %v163 = vmax.f32 %v160, 1e-24
    %v164 = vmax.f32 %v162, 1e-24
    %v165 = vrsqrt.pop %v163
    %v166 = vrsqrt.pop %v164
    %v167 = vmul.f32 %v149, %v165
    %v168 = vmul.f32 %v154, %v166
    %v169 = vld [vmem:[#allocation7] sm:$0xff]
    %v170 = vld [vmem:[#allocation7 + $0x8] sm:$0xff]
    %v171 = vld [vmem:[#allocation7 + $0x10] sm:$0xff]
    %v172 = vld [vmem:[#allocation7 + $0x18] sm:$0xff]
    %v173 = vld [vmem:[#allocation7 + $0x20] sm:$0xff]
    %v174 = vld [vmem:[#allocation7 + $0x28] sm:$0xff]
    %v175 = vld [vmem:[#allocation7 + $0x30] sm:$0xff]
    %v176 = vld [vmem:[#allocation7 + $0x38] sm:$0xff]
    %v177 = vld [vmem:[#allocation7 + $0x40] sm:$0xff]
    %v178 = vld [vmem:[#allocation7 + $0x48] sm:$0xff]
    %v179 = vld [vmem:[#allocation7 + $0x50] sm:$0xff]
    %v180 = vld [vmem:[#allocation7 + $0x58] sm:$0xff]
    %v181 = vld [vmem:[#allocation7 + $0x60] sm:$0xff]
    %v182 = vld [vmem:[#allocation7 + $0x68] sm:$0xff]
    %v183 = vld [vmem:[#allocation7 + $0x70] sm:$0xff]
    %v184 = vld [vmem:[#allocation7 + $0x78] sm:$0xff]
    %v185 = vld [vmem:[%s3 + $0x1] sm:$0x1]
    %v186 = vlaneseq
    %v187 = vshrl.u32 %v186, 7
    %v188 = vsub.s32 0, %v187
    %v189 = vrot.slane %v185, %v188
    %190 = vmatprep.subr.mxu0 0.0
    %191 = vmatpush1.msra.mxu0 %v169
    %192 = vmatprep.subr.mxu0 0.0
    %193 = vmatpush1.msra.mxu0 %v170
    %194 = vmatprep.subr.mxu0 0.0
    %195 = vmatpush1.msra.mxu0 %v171
    %196 = vmatprep.subr.mxu0 0.0
    %197 = vmatpush1.msra.mxu0 %v172
    %198 = vmatprep.subr.mxu0 0.0
    %199 = vmatpush1.msra.mxu0 %v173
    %200 = vmatprep.subr.mxu0 0.0
    %201 = vmatpush1.msra.mxu0 %v174
    %202 = vmatprep.subr.mxu0 0.0
    %203 = vmatpush1.msra.mxu0 %v175
    %204 = vmatprep.subr.mxu0 0.0
    %205 = vmatpush1.msra.mxu0 %v176
    %206 = vmatprep.subr.mxu0 0.0
    %207 = vmatpush1.msra.mxu0 %v177
    %208 = vmatprep.subr.mxu0 0.0
    %209 = vmatpush1.msra.mxu0 %v178
    %210 = vmatprep.subr.mxu0 0.0
    %211 = vmatpush1.msra.mxu0 %v179
    %212 = vmatprep.subr.mxu0 0.0
    %213 = vmatpush1.msra.mxu0 %v180
    %214 = vmatprep.subr.mxu0 0.0
    %215 = vmatpush1.msra.mxu0 %v181
    %216 = vmatprep.subr.mxu0 0.0
    %217 = vmatpush1.msra.mxu0 %v182
    %218 = vmatprep.subr.mxu0 0.0
    %219 = vmatpush1.msra.mxu0 %v183
    %220 = vmatprep.subr.mxu0 0.0
    %221 = vmatpush1.msra.mxu0 %v184
    %222 = vmatprep.subr.mxu0 0.0
    %223 = vmatpush1.msra.mxu0 0.0
    %224 = vmatprep.subr.mxu0 0.0
    %225 = vmatpush1.msra.mxu0 0.0
    %226 = vmatprep.subr.mxu0 0.0
    %227 = vmatpush1.msra.mxu0 0.0
    %228 = vmatprep.subr.mxu0 0.0
    %229 = vmatpush1.msra.mxu0 0.0
    %230 = vmatprep.subr.mxu0 0.0
    %231 = vmatpush1.msra.mxu0 0.0
    %232 = vmatprep.subr.mxu0 0.0
    %233 = vmatpush1.msra.mxu0 0.0
    %234 = vmatprep.subr.mxu0 0.0
    %235 = vmatpush1.msra.mxu0 0.0
    %236 = vmatprep.subr.mxu0 0.0
    %237 = vmatpush1.msra.mxu0 0.0
    %238 = vmatprep.subr.mxu0 0.0
    %239 = vmatpush1.msra.mxu0 0.0
    %240 = vmatprep.subr.mxu0 0.0
    %241 = vmatpush1.msra.mxu0 0.0
    %242 = vmatprep.subr.mxu0 0.0
    %243 = vmatpush1.msra.mxu0 0.0
    %244 = vmatprep.subr.mxu0 0.0
    %245 = vmatpush1.msra.mxu0 0.0
    %246 = vmatprep.subr.mxu0 0.0
    %247 = vmatpush1.msra.mxu0 0.0
    %248 = vmatprep.subr.mxu0 0.0
    %249 = vmatpush1.msra.mxu0 0.0
    %250 = vmatprep.subr.mxu0 0.0
    %251 = vmatpush1.msra.mxu0 0.0
    %252 = vmatprep.subr.mxu0 0.0
    %253 = vmatpush1.msra.mxu0 0.0
    %254 = vmatprep.mubr.f32.mxu0 0.0
    %255 = vmatmul.mubr.f32.gmra.mrb[0].mxu0 %v167
    %v256 = vpop.f32.mrb[0].mxu0
    %v257 = vadd.f32 %v189, %v256
    %v258 = vpop.f32.mrb[0].mxu0
    %259 = vmatprep.mubr.f32.mxu0 0.0
    %260 = vmatmul.mubr.f32.gmra.mrb[0].mxu0 %v168
    %v261 = vpop.f32.mrb[0].mxu0
    %v262 = vadd.f32 %v189, %v261
    %v263 = vpop.f32.mrb[0].mxu0
    %264 = vdwg.mxu0
    %265 = vst [vmem:[#allocation8] sm:$0xff] %v257
    %266 = vst [vmem:[#allocation8 + $0x8] sm:$0xff] %v262
    // Predicated region
    $region30: #{multi_encoder_decoder.1} parent=1 // pred_check
      _
    $region31: #{multi_encoder_decoder.1} parent=1 // pred_check_branch
      %268 = sbr.rel (0) target = $region33
    $region32: #{multi_encoder_decoder.1} parent=1 // pred_region
      %s270 = ssub.s32 256, 256
      %271 = vsyncadd [#allocation4], %s270
      %s272 = sshll.u32 [#allocation8], 4
      %s273 = int_to_ptr.vmem [resolvable:$true] %s272
      %278 = dma.vmem_to_hbm [thread:$0]  %s273, 256, %s4, [#allocation4], 128, 128, 8
    $region33: #{multi_encoder_decoder.1} parent=1 // pred_fallthru
      _
    // Predicated region
    $region34: #{multi_encoder_decoder.1} parent=1 // pred_check
      _
    $region35: #{multi_encoder_decoder.1} parent=1 // pred_check_branch
      %280 = sbr.rel (0) target = $region37
    $region36: #{multi_encoder_decoder.1} parent=1 // pred_region
      %281 = dma.done [#allocation4], 256
    $region37: #{multi_encoder_decoder.1} parent=1 // pred_fallthru
      _
    %282 = vsyncpa [#allocation3], 1
    %283 = vsyncpa [#allocation6], 1
    %284 = vsyncpa [#allocation4], 1

</llo_original>
